<compile_context>
chip_gen: v7x
topology: tpu7x:2x2x1
jax: 0.10.0
libtpu: 0.0.40
codegen_flags: <defaults>
</compile_context>

<pallas_src>
import functools

import jax
import jax.numpy as jnp
from jax.experimental import pallas as pl
from jax.experimental.pallas import tpu as pltpu


_LANE = 128
_FAST_PATH_MAX_ELEMS = 1 << 20  # B*K*N below this -> plain XLA dot fast path


def _round_up(v, m):
    return ((v + m - 1) // m) * m


def _pad2(a, rows, cols):
    r, c = a.shape
    if (r, c) == (rows, cols):
        return a
    return jnp.pad(a, ((0, rows - r), (0, cols - c)))


# --------------------------------------------------------------------------- #
# Kernels
# --------------------------------------------------------------------------- #
def _linear_kernel_f32(x_ref, w_ref, b_ref, o_ref):
    """o = x @ w + b with the f32 output tile itself as the accumulator.

    o_ref's block index is k-invariant, so the tile stays resident in VMEM
    across the reduction axis; the bias is folded into the k==0 initialisation,
    so there is no scratch buffer and no epilogue copy.
    """
    k = pl.program_id(2)

    @pl.when(k == 0)
    def _init():
        o_ref[...] = jnp.broadcast_to(b_ref[...], o_ref.shape)

    o_ref[...] += jnp.dot(x_ref[...], w_ref[...], preferred_element_type=jnp.float32)


def _linear_kernel_acc(x_ref, w_ref, b_ref, o_ref, acc_ref):
    """Same math via an f32 scratch accumulator (only for non-f32 outputs)."""
    k = pl.program_id(2)

    @pl.when(k == 0)
    def _init():
        acc_ref[...] = jnp.broadcast_to(b_ref[...], acc_ref.shape)

    acc_ref[...] += jnp.dot(x_ref[...], w_ref[...], preferred_element_type=jnp.float32)

    @pl.when(k == pl.num_programs(2) - 1)
    def _finalize():
        o_ref[...] = acc_ref[...].astype(o_ref.dtype)


# --------------------------------------------------------------------------- #
# Tiled pallas_call wrapper (operands already padded / tile-aligned)
# --------------------------------------------------------------------------- #
def _pallas_linear(xp, wtp, bp, *, out_dtype, tm, tn, tk, vmem_limit):
    Mp, Kp = xp.shape
    Kp2, Np = wtp.shape
    assert Kp == Kp2 and Mp % tm == 0 and Np % tn == 0 and Kp % tk == 0

    grid = (Mp // tm, Np // tn, Kp // tk)
    in_isz = jnp.dtype(xp.dtype).itemsize
    # Account for operand re-reads across the M/N grid (advisory only).
    cost = pl.CostEstimate(
        flops=2 * Mp * Np * Kp,
        transcendentals=0,
        bytes_accessed=(
            in_isz * (Mp * Kp * (Np // tn) + Kp * Np * (Mp // tm))
            + 4 * (Mp * Np + Np)
        ),
    )

    in_specs = [
        pl.BlockSpec((tm, tk), lambda i, j, k: (i, k)),   # x tile
        pl.BlockSpec((tk, tn), lambda i, j, k: (k, j)),   # W.T tile, already (K, N)
        pl.BlockSpec((1, tn), lambda i, j, k: (0, j)),    # bias tile (k-invariant)
    ]
    out_spec = pl.BlockSpec((tm, tn), lambda i, j, k: (i, j))

    if jnp.dtype(out_dtype) == jnp.float32:
        kernel = _linear_kernel_f32
        scratch = []
    else:
        kernel = _linear_kernel_acc
        scratch = [pltpu.VMEM((tm, tn), jnp.float32)]

    return pl.pallas_call(
        kernel,
        out_shape=jax.ShapeDtypeStruct((Mp, Np), out_dtype),
        grid_spec=pltpu.PrefetchScalarGridSpec(
            num_scalar_prefetch=0,
            grid=grid,
            in_specs=in_specs,
            out_specs=out_spec,
            scratch_shapes=scratch,
        ),
        compiler_params=pltpu.CompilerParams(
            dimension_semantics=("parallel", "parallel", "arbitrary"),
            vmem_limit_bytes=vmem_limit,
        ),
        cost_estimate=cost,
    )(xp, wtp, bp)


@functools.partial(
    jax.jit, static_argnames=("out_dim", "tm", "tn", "tk", "vmem_limit")
)
def _pallas_forward(x, wtp, bp, *, out_dim, tm, tn, tk, vmem_limit):
    """Pad x (only if needed), run the tiled kernel, strip padding (if any)."""
    B, K = x.shape
    Kp = wtp.shape[0]
    cd = wtp.dtype
    sub = 16 if cd == jnp.bfloat16 else 8

    Mp = _round_up(B, sub)
    tm_eff = min(tm, Mp)
    Mp = _round_up(Mp, tm_eff)

    xp = x.astype(cd)
    if (B, K) != (Mp, Kp):
        xp = jnp.pad(xp, ((0, Mp - B), (0, Kp - K)))

    out = _pallas_linear(
        xp, wtp, bp,
        out_dtype=x.dtype, tm=tm_eff, tn=tn, tk=tk, vmem_limit=vmem_limit,
    )
    if out.shape != (B, out_dim):
        out = out[:B, :out_dim]
    return out


# --------------------------------------------------------------------------- #
# Module port: prepares the weight layout ONCE, reuses it every forward call.
# --------------------------------------------------------------------------- #
class ProjectionHeadPallas:
    """Pallas port of `nn.Linear(input_dim, output_dim)` (ProjectionHead)."""

    def __init__(self, weight, bias, *, tm=512, tn=512, tk=1024,
                 compute_dtype=None):
        N, K = weight.shape
        assert bias.shape == (N,), "bias/weight shape mismatch"
        self.input_dim = int(K)
        self.output_dim = int(N)

        cd = jnp.dtype(compute_dtype) if compute_dtype is not None else jnp.dtype(weight.dtype)
        sub = 16 if cd == jnp.bfloat16 else 8

        # Sanitize tile sizes to legal (sublane, lane) multiples.
        tm = _round_up(max(tm, sub), sub)
        tn = _round_up(max(tn, _LANE), _LANE)
        tk = _round_up(max(tk, _LANE), _LANE)

        # Pad K / N to lane multiples, clamp tiles, then make tiles divide evenly.
        Kp = _round_up(K, _LANE)
        Np = _round_up(N, _LANE)
        tk = min(tk, Kp)
        tn = min(tn, Np)
        Kp = _round_up(Kp, tk)
        Np = _round_up(Np, tn)

        # One-time layout plumbing: (N, K) PyTorch weight -> padded (Kp, Np).
        self._wtp = _pad2(jnp.asarray(weight).T.astype(cd), Kp, Np)
        self._bp = _pad2(jnp.asarray(bias).reshape(1, N).astype(jnp.float32), 1, Np)

        # VMEM budget: double-buffered inputs + resident/double-buffered output
        # (+ margin). Capped at 48 MiB so it stays safe under v7x's 64 MiB/TC.
        in_isz = jnp.dtype(cd).itemsize
        tile_bytes = (2 * (tm * tk * in_isz + tk * tn * in_isz + tn * 4)
                      + 3 * tm * tn * 4)
        vmem_limit = int(min(48 * 1024 * 1024, max(32 * 1024 * 1024, 2 * tile_bytes)))

        self._forward = functools.partial(
            _pallas_forward,
            out_dim=self.output_dim, tm=tm, tn=tn, tk=tk, vmem_limit=vmem_limit,
        )

    def __call__(self, x, *, allow_fast_path=True):
        B, K = x.shape
        if K != self.input_dim:
            raise ValueError(f"expected input dim {self.input_dim}, got {K}")
        # Toy-size fast path: pallas_call fixed overhead dwarfs ~kFLOPs of work.
        if allow_fast_path and B * self.input_dim * self.output_dim <= _FAST_PATH_MAX_ELEMS:
            w = self._wtp[: self.input_dim, : self.output_dim].astype(x.dtype)
            b = self._bp[0, : self.output_dim].astype(x.dtype)
            return x @ w + b
        return self._forward(x, self._wtp, self._bp)


def projection_head(x, weight, bias, **kwargs):
    """One-shot functional wrapper (prefer ProjectionHeadPallas for reuse)."""
    return ProjectionHeadPallas(weight, bias, **kwargs)(x)


# --------------------------------------------------------------------------- #
# Self-test
# --------------------------------------------------------------------------- #
if __name__ == "__main__":
    # Small shapes implied by the module: batch=8, input_dim=32, output_dim=16.
    batch, input_dim, output_dim = 8, 32, 16

    key = jax.random.PRNGKey(0)
    kx, kw, kb = jax.random.split(key, 3)
    bound = 1.0 / (input_dim ** 0.5)  # PyTorch-style uniform init range
    x = jax.random.normal(kx, (batch, input_dim), dtype=jnp.float32)
    weight = jax.random.uniform(kw, (output_dim, input_dim),
                                minval=-bound, maxval=bound, dtype=jnp.float32)
    bias = jax.random.uniform(kb, (output_dim,),
                              minval=-bound, maxval=bound, dtype=jnp.float32)

    head = ProjectionHeadPallas(weight, bias)
    ref = x @ weight.T + bias

    # Fast path (what production would hit at this toy size).
    out_fast = jax.block_until_ready(head(x))
    assert out_fast.shape == (batch, output_dim)
    assert jnp.allclose(out_fast, ref, atol=1e-5, rtol=1e-5), "fast-path mismatch"

    # Force the Pallas kernel on the small shape too (padding path, grid (1,1,1)).
    out_pallas = jax.block_until_ready(head(x, allow_fast_path=False))
    assert out_pallas.shape == (batch, output_dim)
    assert jnp.allclose(out_pallas, ref, atol=1e-5, rtol=1e-5), "pallas mismatch"

    # Larger, tile-aligned, multi-tile shape: exercises the pad-skip path and the
    # (2, 2, 2) grid with the resident-output accumulator.
    B2, K2, N2 = 1024, 2048, 1024
    kx2, kw2, kb2 = jax.random.split(jax.random.PRNGKey(1), 3)
    x2 = jax.random.normal(kx2, (B2, K2), dtype=jnp.float32)
    w2 = jax.random.normal(kw2, (N2, K2), dtype=jnp.float32) * 0.02
    b2 = jax.random.normal(kb2, (N2,), dtype=jnp.float32) * 0.02

    head2 = ProjectionHeadPallas(w2, b2)      # weight transposed/padded once here
    out2 = jax.block_until_ready(head2(x2))
    ref2 = x2 @ w2.T + b2
    assert jnp.allclose(out2, ref2, atol=1e-3, rtol=1e-3), "large-shape mismatch"

    # Precision-gated bf16 compute path (f32 accumulation), loose tolerance.
    head2_bf16 = ProjectionHeadPallas(w2, b2, compute_dtype=jnp.bfloat16)
    out2_bf16 = jax.block_until_ready(head2_bf16(x2))
    assert jnp.allclose(out2_bf16, ref2, atol=5e-2, rtol=5e-2), "bf16 path mismatch"

    print("KERNEL_OK")
</pallas_src>

<mosaic_0001>
module attributes {stable_mosaic.version = 11 : i64} {
  func.func @_linear_kernel_f32(%arg0: i32, %arg1: i32, %arg2: i32, %arg3: memref<8x128xf32, #tpu.memory_space<vmem>>, %arg4: memref<128x128xf32, #tpu.memory_space<vmem>>, %arg5: memref<1x128xf32, #tpu.memory_space<vmem>>, %arg6: memref<8x128xf32, #tpu.memory_space<vmem>>) attributes {dimension_semantics = [#tpu.dimension_semantics<parallel>, #tpu.dimension_semantics<parallel>, #tpu.dimension_semantics<arbitrary>], iteration_bounds = array<i64: 1, 1, 1>, scalar_prefetch = 0 : i64, scratch_operands = 0 : i64, tpu.core_type = #tpu.core_type<tc>, window_params = [{transform_indices = @transform_0, window_bounds = array<i64: 8, 128>}, {transform_indices = @transform_1, window_bounds = array<i64: 128, 128>}, {transform_indices = @transform_2, window_bounds = array<i64: 1, 128>}, {transform_indices = @transform_3, window_bounds = array<i64: 8, 128>}]} {
    %c0_i32 = arith.constant 0 : i32
    %0 = arith.cmpi eq, %arg2, %c0_i32 : i32
    %1 = arith.extui %0 : i1 to i32
    %c0_i32_0 = arith.constant 0 : i32
    %2 = arith.cmpi ne, %1, %c0_i32_0 : i32
    scf.if %2 {
      %c0_8 = arith.constant 0 : index
      %c0_9 = arith.constant 0 : index
      %9 = vector.load %arg5[%c0_8, %c0_9] : memref<1x128xf32, #tpu.memory_space<vmem>>, vector<1x128xf32>
      %10 = vector.shape_cast %9 : vector<1x128xf32> to vector<1x128xf32>
      %11 = vector.broadcast %10 : vector<1x128xf32> to vector<8x128xf32>
      %c0_10 = arith.constant 0 : index
      %c0_11 = arith.constant 0 : index
      %12 = vector.load %arg6[%c0_10, %c0_11] : memref<8x128xf32, #tpu.memory_space<vmem>>, vector<8x128xf32>
      tpu.vector_store %arg6[%c0_10, %c0_11], %11 {strides = array<i32>} : memref<8x128xf32, #tpu.memory_space<vmem>>, vector<8x128xf32>,
    } else {
    }
    %c0 = arith.constant 0 : index
    %c0_1 = arith.constant 0 : index
    %3 = vector.load %arg6[%c0, %c0_1] : memref<8x128xf32, #tpu.memory_space<vmem>>, vector<8x128xf32>
    %c0_2 = arith.constant 0 : index
    %c0_3 = arith.constant 0 : index
    %4 = vector.load %arg3[%c0_2, %c0_3] : memref<8x128xf32, #tpu.memory_space<vmem>>, vector<8x128xf32>
    %c0_4 = arith.constant 0 : index
    %c0_5 = arith.constant 0 : index
    %5 = vector.load %arg4[%c0_4, %c0_5] : memref<128x128xf32, #tpu.memory_space<vmem>>, vector<128x128xf32>
    %cst = arith.constant dense<0.000000e+00> : vector<8x128xf32>
    %6 = tpu.matmul %4, %5, %cst {dimension_numbers = #tpu.dot_dimension_numbers<[1], [0], [0], [1], [0, 0, 1, 1], [], []>} : vector<8x128xf32>, vector<128x128xf32>, vector<8x128xf32> -> vector<8x128xf32>
    %7 = arith.addf %3, %6 : vector<8x128xf32>
    %c0_6 = arith.constant 0 : index
    %c0_7 = arith.constant 0 : index
    %8 = vector.load %arg6[%c0_6, %c0_7] : memref<8x128xf32, #tpu.memory_space<vmem>>, vector<8x128xf32>
    tpu.vector_store %arg6[%c0_6, %c0_7], %7 {strides = array<i32>} : memref<8x128xf32, #tpu.memory_space<vmem>>, vector<8x128xf32>,
    return
  }
  func.func @transform_0(%arg0: i32, %arg1: i32, %arg2: i32) -> (i32, i32) {
    %c0_i32 = arith.constant 0 : i32
    return %arg0, %arg2 : i32, i32
  }
  func.func @transform_1(%arg0: i32, %arg1: i32, %arg2: i32) -> (i32, i32) {
    %c0_i32 = arith.constant 0 : i32
    return %arg2, %arg1 : i32, i32
  }
  func.func @transform_2(%arg0: i32, %arg1: i32, %arg2: i32) -> (i32, i32) {
    %c0_i32 = arith.constant 0 : i32
    %c0_i32_0 = arith.constant 0 : i32
    return %c0_i32, %arg1 : i32, i32
  }
  func.func @transform_3(%arg0: i32, %arg1: i32, %arg2: i32) -> (i32, i32) {
    %c0_i32 = arith.constant 0 : i32
    return %arg0, %arg1 : i32, i32
  }
}

</mosaic_0001>

<llo_original>
// kernel: _pallas_forward.1
$region0: #{_pallas_forward.1}
  #allocation0 [shape = 'u32[]', space=smem, size = 0x4, offset = 0x4, fixed_abs, tag = 'smem constant byte address 0x4 - core index']
  #allocation1 [shape = 'u32[144,128]{1,0:T(1,128)}', space=vmem, size = 0x12000, scoped, tag = 'internal scratch']
  %s0 = inlined_call_operand.vmem [shape: f32[8,128], index: 0, kind: input, shape index: {}]
  %s1 = inlined_call_operand.hbm [shape: f32[128,128], index: 1, kind: input, shape index: {}]
  %s2 = inlined_call_operand.vmem [shape: f32[1,128], index: 2, kind: input, shape index: {}]
  %s3 = inlined_call_operand.hbm [shape: f32[8,128], index: 3, kind: output, shape index: {}]
  %s4 = sld [smem:[#allocation0]]
  $region30: #{_pallas_forward.1} parent=0
    _
  %s6 = ssub.s32 1, %s4
  %s7 = scalar_select 0, %s6, %s4
  $region1: #{_pallas_forward.1} parent=0
    #allocation2 [shape = 'u8[65536]{0}', space=vmem, size = 0x10000, scoped, tag = 'input window, operand 1, single buffered']
    #allocation3 [shape = 's32[1]{0}', space=sflag, size = 0x4, scoped, tag = 'scoped memory for _pallas_forward.1']
    #allocation4 [shape = 's32[1]{0}', space=sflag, size = 0x4, scoped, tag = 'scoped memory for _pallas_forward.1']
    #allocation5 [shape = 'u8[4096]{0}', space=vmem, size = 0x1000, scoped, tag = 'output window, operand 0, single buffered']
    %8 = vsyncpa [#allocation3], 0
    %9 = vsyncpa [#allocation4], 0
    // Predicated region
    $region2: #{_pallas_forward.1} parent=1 // pred_check
      _
    $region3: #{_pallas_forward.1} parent=1 // pred_check_branch
      %11 = sbr.rel (0) target = $region5
    $region4: #{_pallas_forward.1} parent=1 // pred_region
      _
    $region5: #{_pallas_forward.1} parent=1 // pred_fallthru
      _
    // Predicated region
    $region6: #{_pallas_forward.1} parent=1 // pred_check
      _
    $region7: #{_pallas_forward.1} parent=1 // pred_check_branch
      %13 = sbr.rel (0) target = $region9
    $region8: #{_pallas_forward.1} parent=1 // pred_region
      %s15 = ssub.s32 2048, 2048
      %16 = vsyncadd [#allocation3], %s15
      %s17 = sshll.u32 [#allocation2], 4
      %s18 = int_to_ptr.vmem [resolvable:$true] %s17
      %23 = dma.hbm_to_vmem [thread:$0]  %s1, 2048, %s18, [#allocation3], 128, 128, 8
    $region9: #{_pallas_forward.1} parent=1 // pred_fallthru
      _
    // Predicated region
    $region10: #{_pallas_forward.1} parent=1 // pred_check
      _
    $region11: #{_pallas_forward.1} parent=1 // pred_check_branch
      %25 = sbr.rel (0) target = $region13
    $region12: #{_pallas_forward.1} parent=1 // pred_region
      _
    $region13: #{_pallas_forward.1} parent=1 // pred_fallthru
      _
    // Predicated region
    $region14: #{_pallas_forward.1} parent=1 // pred_check
      _
    $region15: #{_pallas_forward.1} parent=1 // pred_check_branch
      %27 = sbr.rel (0) target = $region17
    $region16: #{_pallas_forward.1} parent=1 // pred_region
      %28 = dma.done [#allocation3], 2048
    $region17: #{_pallas_forward.1} parent=1 // pred_fallthru
      _
    %p29 = scmp.eq.s32.totalorder 0, 0
    // Predicated region
    $region18: #{_pallas_forward.1} parent=1 // pred_check
      %p30 = pneg %p29
    $region19: #{_pallas_forward.1} parent=1 // pred_check_branch
      %32 = sbr.rel (%p30) target = $region21
    $region20: #{_pallas_forward.1} parent=1 // pred_region
      %v33 = vld [vmem:[%s2] sm:$0x1]
      %v35 = vlaneseq
      %v36 = vshrl.u32 %v35, 7
      %v37 = vsub.s32 0, %v36
      %v38 = vrot.slane %v33, %v37
      %40 = vst [vmem:[#allocation5] sm:$0xff] %v38
    $region21: #{_pallas_forward.1} parent=1 // pred_fallthru
      _
    %v41 = vld [vmem:[#allocation5] sm:$0xff]
    %v42 = vld [vmem:[%s0] sm:$0xff]
    %v43 = vld [vmem:[#allocation2] sm:$0xff]
    %v44 = vld [vmem:[#allocation2 + $0x8] sm:$0xff]
    %v45 = vld [vmem:[#allocation2 + $0x10] sm:$0xff]
    %v46 = vld [vmem:[#allocation2 + $0x18] sm:$0xff]
    %v47 = vld [vmem:[#allocation2 + $0x20] sm:$0xff]
    %v48 = vld [vmem:[#allocation2 + $0x28] sm:$0xff]
    %v49 = vld [vmem:[#allocation2 + $0x30] sm:$0xff]
    %v50 = vld [vmem:[#allocation2 + $0x38] sm:$0xff]
    %v51 = vld [vmem:[#allocation2 + $0x40] sm:$0xff]
    %v52 = vld [vmem:[#allocation2 + $0x48] sm:$0xff]
    %v53 = vld [vmem:[#allocation2 + $0x50] sm:$0xff]
    %v54 = vld [vmem:[#allocation2 + $0x58] sm:$0xff]
    %v55 = vld [vmem:[#allocation2 + $0x60] sm:$0xff]
    %v56 = vld [vmem:[#allocation2 + $0x68] sm:$0xff]
    %v57 = vld [vmem:[#allocation2 + $0x70] sm:$0xff]
    %v58 = vld [vmem:[#allocation2 + $0x78] sm:$0xff]
    %59 = vmatprep.subr.mxu0 0.0
    %60 = vmatpush1.msra.mxu0 %v43
    %61 = vmatprep.subr.mxu0 0.0
    %62 = vmatpush1.msra.mxu0 %v44
    %63 = vmatprep.subr.mxu0 0.0
    %64 = vmatpush1.msra.mxu0 %v45
    %65 = vmatprep.subr.mxu0 0.0
    %66 = vmatpush1.msra.mxu0 %v46
    %67 = vmatprep.subr.mxu0 0.0
    %68 = vmatpush1.msra.mxu0 %v47
    %69 = vmatprep.subr.mxu0 0.0
    %70 = vmatpush1.msra.mxu0 %v48
    %71 = vmatprep.subr.mxu0 0.0
    %72 = vmatpush1.msra.mxu0 %v49
    %73 = vmatprep.subr.mxu0 0.0
    %74 = vmatpush1.msra.mxu0 %v50
    %75 = vmatprep.subr.mxu0 0.0
    %76 = vmatpush1.msra.mxu0 %v51
    %77 = vmatprep.subr.mxu0 0.0
    %78 = vmatpush1.msra.mxu0 %v52
    %79 = vmatprep.subr.mxu0 0.0
    %80 = vmatpush1.msra.mxu0 %v53
    %81 = vmatprep.subr.mxu0 0.0
    %82 = vmatpush1.msra.mxu0 %v54
    %83 = vmatprep.subr.mxu0 0.0
    %84 = vmatpush1.msra.mxu0 %v55
    %85 = vmatprep.subr.mxu0 0.0
    %86 = vmatpush1.msra.mxu0 %v56
    %87 = vmatprep.subr.mxu0 0.0
    %88 = vmatpush1.msra.mxu0 %v57
    %89 = vmatprep.subr.mxu0 0.0
    %90 = vmatpush1.msra.mxu0 %v58
    %91 = vmatprep.subr.mxu0 0.0
    %92 = vmatpush1.msra.mxu0 0.0
    %93 = vmatprep.subr.mxu0 0.0
    %94 = vmatpush1.msra.mxu0 0.0
    %95 = vmatprep.subr.mxu0 0.0
    %96 = vmatpush1.msra.mxu0 0.0
    %97 = vmatprep.subr.mxu0 0.0
    %98 = vmatpush1.msra.mxu0 0.0
    %99 = vmatprep.subr.mxu0 0.0
    %100 = vmatpush1.msra.mxu0 0.0
    %101 = vmatprep.subr.mxu0 0.0
    %102 = vmatpush1.msra.mxu0 0.0
    %103 = vmatprep.subr.mxu0 0.0
    %104 = vmatpush1.msra.mxu0 0.0
    %105 = vmatprep.subr.mxu0 0.0
    %106 = vmatpush1.msra.mxu0 0.0
    %107 = vmatprep.subr.mxu0 0.0
    %108 = vmatpush1.msra.mxu0 0.0
    %109 = vmatprep.subr.mxu0 0.0
    %110 = vmatpush1.msra.mxu0 0.0
    %111 = vmatprep.subr.mxu0 0.0
    %112 = vmatpush1.msra.mxu0 0.0
    %113 = vmatprep.subr.mxu0 0.0
    %114 = vmatpush1.msra.mxu0 0.0
    %115 = vmatprep.subr.mxu0 0.0
    %116 = vmatpush1.msra.mxu0 0.0
    %117 = vmatprep.subr.mxu0 0.0
    %118 = vmatpush1.msra.mxu0 0.0
    %119 = vmatprep.subr.mxu0 0.0
    %120 = vmatpush1.msra.mxu0 0.0
    %121 = vmatprep.subr.mxu0 0.0
    %122 = vmatpush1.msra.mxu0 0.0
    %123 = vmatprep.mubr.f32.mxu0 0.0
    %124 = vmatmul.mubr.f32.gmra.mrb[0].mxu0 %v42
    %v125 = vpop.f32.mrb[0].mxu0
    %v126 = vadd.f32 0.0, %v125
    %v127 = vpop.f32.mrb[0].mxu0
    %128 = vdwg.mxu0
    %v129 = vadd.f32 %v41, %v126
    %130 = vst [vmem:[#allocation5] sm:$0xff] %v129
    // Predicated region
    $region22: #{_pallas_forward.1} parent=1 // pred_check
      _
    $region23: #{_pallas_forward.1} parent=1 // pred_check_branch
      %132 = sbr.rel (0) target = $region25
    $region24: #{_pallas_forward.1} parent=1 // pred_region
      %s134 = ssub.s32 128, 128
      %135 = vsyncadd [#allocation4], %s134
      %s137 = sshll.u32 [#allocation5], 4
      %s138 = int_to_ptr.vmem [resolvable:$true] %s137
      %140 = dma.vmem_to_hbm [thread:$0]  %s138, 128, %s3, [#allocation4]
    $region25: #{_pallas_forward.1} parent=1 // pred_fallthru
      _
    // Predicated region
    $region26: #{_pallas_forward.1} parent=1 // pred_check
      _
    $region27: #{_pallas_forward.1} parent=1 // pred_check_branch
      %142 = sbr.rel (0) target = $region29
    $region28: #{_pallas_forward.1} parent=1 // pred_region
      %143 = dma.done [#allocation4], 128
    $region29: #{_pallas_forward.1} parent=1 // pred_fallthru
      _
    %144 = vsyncpa [#allocation3], 1
    %145 = vsyncpa [#allocation4], 1

</llo_original>
